<compile_context>
chip_gen: v7x
topology: tpu7x:2x2x1
jax: 0.10.0
libtpu: 0.0.40
codegen_flags: <defaults>
</compile_context>

<pallas_src>
import functools
import math

import jax
import jax.numpy as jnp
from jax import lax
from jax.experimental import pallas as pl
from jax.experimental.pallas import tpu as pltpu

# Conservative scoped-VMEM cap, safe on v5e/v6e (128 MiB physical) and v7x
# (64 MiB physical).  On v5e/v6e with larger L/S tiles raise toward ~100 MiB;
# on v7x keep the resident footprint under ~28 MiB (tq<=256, tk<=512).
_VMEM_LIMIT_BYTES = 32 * 1024 * 1024


def _pick_tile(total: int, target: int) -> int:
  """Largest tile <= target that divides `total` and is a multiple of 8
  (the full dimension is always a legal block size)."""
  if total <= target:
    return total
  for cand in range(min(target, total), 0, -1):
    if total % cand == 0 and cand % 8 == 0:
      return cand
  return total


# ---------------------------------------------------------------------------
# Kernel 1: fused linear projection  y = x @ W_t + b   (W_t is (E, D))
# ---------------------------------------------------------------------------
def _linear_kernel(x_ref, w_ref, b_ref, o_ref):
  o_ref[...] = (
      jnp.dot(x_ref[...], w_ref[...], preferred_element_type=jnp.float32)
      + b_ref[...]
  ).astype(o_ref.dtype)


def _linear_pallas(x, w_t, b_row, *, row_tile=256):
  rows, e = x.shape
  d = w_t.shape[1]
  tr = _pick_tile(rows, row_tile)
  return pl.pallas_call(
      _linear_kernel,
      out_shape=jax.ShapeDtypeStruct((rows, d), x.dtype),
      grid_spec=pltpu.PrefetchScalarGridSpec(
          num_scalar_prefetch=0,
          grid=(rows // tr,),
          in_specs=[
              pl.BlockSpec((tr, e), lambda i: (i, 0)),
              pl.BlockSpec((e, d), lambda i: (0, 0)),   # weight stays resident
              pl.BlockSpec((1, d), lambda i: (0, 0)),   # bias stays resident
          ],
          out_specs=pl.BlockSpec((tr, d), lambda i: (i, 0)),
      ),
      compiler_params=pltpu.CompilerParams(
          dimension_semantics=("parallel",),
          vmem_limit_bytes=_VMEM_LIMIT_BYTES,
      ),
  )(x, w_t, b_row)


# ---------------------------------------------------------------------------
# Kernel 2: attention with online softmax.
# grid = (N, L//tq, S//tk); S (reduction) axis last, marked "arbitrary".
# ---------------------------------------------------------------------------
def _attn_kernel(q_ref, k_ref, v_ref, o_ref, *rest, scale, block_k,
                 need_weights):
  if need_weights:
    w_ref, m_sc, l_sc, acc_sc = rest
  else:
    w_ref = None
    m_sc, l_sc, acc_sc = rest

  ki = pl.program_id(2)
  nk = pl.num_programs(2)

  @pl.when(ki == 0)
  def _init():
    m_sc[...] = jnp.full_like(m_sc, -jnp.inf)
    l_sc[...] = jnp.zeros_like(l_sc)
    acc_sc[...] = jnp.zeros_like(acc_sc)
    if w_ref is not None:
      w_ref[...] = jnp.zeros_like(w_ref)

  q = q_ref[0]  # (tq, D)
  k = k_ref[0]  # (tk, D)
  v = v_ref[0]  # (tk, D)

  # q @ k^T without an explicit transpose: contract the feature dims; f32 acc.
  s = lax.dot_general(q, k, (((1,), (1,)), ((), ())),
                      preferred_element_type=jnp.float32)
  if scale != 1.0:
    s = s * scale

  m_prev = m_sc[...]                                          # (tq, 1)
  m_new = jnp.maximum(m_prev, jnp.max(s, axis=-1, keepdims=True))
  alpha = jnp.exp(m_prev - m_new)                             # (tq, 1)
  p = jnp.exp(s - m_new)                                      # (tq, tk) f32

  l_sc[...] = alpha * l_sc[...] + jnp.sum(p, axis=-1, keepdims=True)
  acc_sc[...] = alpha * acc_sc[...] + lax.dot_general(
      p.astype(v.dtype), v, (((1,), (0,)), ((), ())),
      preferred_element_type=jnp.float32)
  m_sc[...] = m_new

  if w_ref is not None:
    # (tq, S) weights stripe is resident across the S axis: rescale what is
    # already there (still zero for unvisited tiles) and write this tile's
    # unnormalized probabilities into its column slice.
    w_ref[0] = w_ref[0] * alpha
    start = pl.multiple_of(ki * block_k, block_k)
    w_ref[0, :, pl.ds(start, block_k)] = p

  @pl.when(ki == nk - 1)
  def _finalize():
    inv_l = pl.reciprocal(l_sc[...], approx=True)   # EUP; frees VALU slots
    o_ref[0] = (acc_sc[...] * inv_l).astype(o_ref.dtype)
    if w_ref is not None:
      w_ref[0] = w_ref[0] * inv_l


def _attention_pallas(q, k, v, *, scale, need_weights, tq=None, tk=None):
  n, l, d = q.shape
  _, s, _ = k.shape
  # tq<=256 / tk<=256 keeps the footprint v7x-safe; v5e/v6e can go larger.
  # In production tk should be a multiple of 128 for lane-dense stores.
  tq = tq if tq is not None else _pick_tile(l, 256)
  tk = tk if tk is not None else _pick_tile(s, 256)
  assert l % tq == 0 and s % tk == 0

  kernel = functools.partial(_attn_kernel, scale=scale, block_k=tk,
                             need_weights=need_weights)

  in_specs = [
      pl.BlockSpec((1, tq, d), lambda b, qi, ki: (b, qi, 0)),
      pl.BlockSpec((1, tk, d), lambda b, qi, ki: (b, ki, 0)),
      pl.BlockSpec((1, tk, d), lambda b, qi, ki: (b, ki, 0)),
  ]
  out_spec_o = pl.BlockSpec((1, tq, d), lambda b, qi, ki: (b, qi, 0))
  if need_weights:
    out_shape = (jax.ShapeDtypeStruct((n, l, d), q.dtype),
                 jax.ShapeDtypeStruct((n, l, s), jnp.float32))
    out_specs = (out_spec_o,
                 pl.BlockSpec((1, tq, s), lambda b, qi, ki: (b, qi, 0)))
  else:
    out_shape = jax.ShapeDtypeStruct((n, l, d), q.dtype)
    out_specs = out_spec_o

  scratch_shapes = [
      pltpu.VMEM((tq, 1), jnp.float32),   # running row max
      pltpu.VMEM((tq, 1), jnp.float32),   # running row sum
      pltpu.VMEM((tq, d), jnp.float32),   # f32 output accumulator
  ]

  res = pl.pallas_call(
      kernel,
      out_shape=out_shape,
      grid_spec=pltpu.PrefetchScalarGridSpec(
          num_scalar_prefetch=0,
          grid=(n, l // tq, s // tk),
          in_specs=in_specs,
          out_specs=out_specs,
          scratch_shapes=scratch_shapes,
      ),
      compiler_params=pltpu.CompilerParams(
          dimension_semantics=("parallel", "parallel", "arbitrary"),
          vmem_limit_bytes=_VMEM_LIMIT_BYTES,
      ),
  )(q, k, v)

  if need_weights:
    return res[0], res[1]
  return res, None


# ---------------------------------------------------------------------------
# Public wrapper mirroring DotProductAttention.forward (default config).
# ---------------------------------------------------------------------------
def dot_product_attention(query, key, value, weight, bias=None, *,
                          scaled=False, transform=True, batch_first=True,
                          need_weights=True, tq=None, tk=None):
  """query (N,L,E), key/value (N,S,E); weight (D,E), bias (D,) (nn.Linear)."""
  if not batch_first:
    query = jnp.swapaxes(query, 0, 1)
    key = jnp.swapaxes(key, 0, 1)
    value = jnp.swapaxes(value, 0, 1)

  n, l, e = query.shape
  _, s, _ = key.shape

  if transform:
    d = weight.shape[0]
    b = bias if bias is not None else jnp.zeros((d,), query.dtype)
    # Fused projection: one (N*(L+2S), E) @ (E, D) matmul (same_embd=True).
    x = jnp.concatenate([query, key, value], axis=1).reshape(n * (l + 2 * s), e)
    proj = _linear_pallas(x, weight.T, b.reshape(1, d))
    proj = proj.reshape(n, l + 2 * s, d)
    q, k, v = proj[:, :l], proj[:, l:l + s], proj[:, l + s:]
  else:
    d = e
    q, k, v = query, key, value

  scale = (1.0 / math.sqrt(d)) if scaled else 1.0
  out, attn = _attention_pallas(q, k, v, scale=scale,
                                need_weights=need_weights, tq=tq, tk=tk)
  if not batch_first:
    out = jnp.swapaxes(out, 0, 1)
  return out, attn


# ---------------------------------------------------------------------------
# Pure-JAX reference (mirrors the PyTorch module's forward).
# ---------------------------------------------------------------------------
def _reference(query, key, value, weight, bias, *, scaled=False):
  def lin(x):
    return x @ weight.T + bias
  q, k, v = lin(query), lin(key), lin(value)
  a = jnp.einsum("nld,nsd->nls", q, k)
  if scaled:
    a = a / math.sqrt(weight.shape[0])
  attn = jax.nn.softmax(a, axis=-1)
  out = jnp.einsum("nls,nsd->nld", attn, v)
  return out, attn


if __name__ == "__main__":
  import numpy as np

  N, L, S, E = 2, 16, 16, 32
  D = E  # output_dim defaults to qdim

  root = jax.random.PRNGKey(0)
  kq, kk, kv, kw, kb = jax.random.split(root, 5)
  query = jax.random.normal(kq, (N, L, E), dtype=jnp.float32)
  key = jax.random.normal(kk, (N, S, E), dtype=jnp.float32)
  value = jax.random.normal(kv, (N, S, E), dtype=jnp.float32)
  bound = 1.0 / math.sqrt(E)
  weight = jax.random.uniform(kw, (D, E), jnp.float32, -bound, bound)
  bias = jax.random.uniform(kb, (D,), jnp.float32, -bound, bound)

  # Small tiles so the 3-D grid / online-softmax path is actually exercised.
  out, attn = dot_product_attention(query, key, value, weight, bias,
                                    tq=8, tk=8)
  out, attn = jax.block_until_ready((out, attn))

  ref_out, ref_attn = _reference(query, key, value, weight, bias)
  np.testing.assert_allclose(np.asarray(out), np.asarray(ref_out),
                             atol=2e-2, rtol=2e-2)
  np.testing.assert_allclose(np.asarray(attn), np.asarray(ref_attn),
                             atol=2e-2, rtol=2e-2)

  # need_weights=False fast path: skips the (N, L, S) weights writeback.
  out_nw, attn_nw = dot_product_attention(query, key, value, weight, bias,
                                          tq=8, tk=8, need_weights=False)
  out_nw = jax.block_until_ready(out_nw)
  assert attn_nw is None
  np.testing.assert_allclose(np.asarray(out_nw), np.asarray(ref_out),
                             atol=2e-2, rtol=2e-2)

  print("KERNEL_OK")
</pallas_src>

<mosaic_0001>
module attributes {stable_mosaic.version = 11 : i64} {
  func.func @_linear_kernel(%arg0: i32, %arg1: memref<96x32xf32, #tpu.memory_space<vmem>>, %arg2: memref<32x32xf32, #tpu.memory_space<vmem>>, %arg3: memref<1x32xf32, #tpu.memory_space<vmem>>, %arg4: memref<96x32xf32, #tpu.memory_space<vmem>>) attributes {dimension_semantics = [#tpu.dimension_semantics<parallel>], iteration_bounds = array<i64: 1>, scalar_prefetch = 0 : i64, scratch_operands = 0 : i64, tpu.core_type = #tpu.core_type<tc>, window_params = [{transform_indices = @transform_0, window_bounds = array<i64: 96, 32>}, {pipeline_mode = #tpu.pipeline_mode<synchronous>, transform_indices = @transform_1, window_bounds = array<i64: 32, 32>}, {pipeline_mode = #tpu.pipeline_mode<synchronous>, transform_indices = @transform_2, window_bounds = array<i64: 1, 32>}, {transform_indices = @transform_3, window_bounds = array<i64: 96, 32>}]} {
    %c0 = arith.constant 0 : index
    %c0_0 = arith.constant 0 : index
    %0 = vector.load %arg1[%c0, %c0_0] : memref<96x32xf32, #tpu.memory_space<vmem>>, vector<96x32xf32>
    %c0_1 = arith.constant 0 : index
    %c0_2 = arith.constant 0 : index
    %1 = vector.load %arg2[%c0_1, %c0_2] : memref<32x32xf32, #tpu.memory_space<vmem>>, vector<32x32xf32>
    %cst = arith.constant dense<0.000000e+00> : vector<96x32xf32>
    %2 = tpu.matmul %0, %1, %cst {dimension_numbers = #tpu.dot_dimension_numbers<[1], [0], [0], [1], [0, 0, 1, 1], [], []>} : vector<96x32xf32>, vector<32x32xf32>, vector<96x32xf32> -> vector<96x32xf32>
    %c0_3 = arith.constant 0 : index
    %c0_4 = arith.constant 0 : index
    %3 = vector.load %arg3[%c0_3, %c0_4] : memref<1x32xf32, #tpu.memory_space<vmem>>, vector<1x32xf32>
    %4 = vector.broadcast %3 : vector<1x32xf32> to vector<96x32xf32>
    %5 = arith.addf %2, %4 : vector<96x32xf32>
    %c0_5 = arith.constant 0 : index
    %c0_6 = arith.constant 0 : index
    %6 = vector.load %arg4[%c0_5, %c0_6] : memref<96x32xf32, #tpu.memory_space<vmem>>, vector<96x32xf32>
    tpu.vector_store %arg4[%c0_5, %c0_6], %5 {strides = array<i32>} : memref<96x32xf32, #tpu.memory_space<vmem>>, vector<96x32xf32>,
    return
  }
  func.func @transform_0(%arg0: i32) -> (i32, i32) {
    %c0_i32 = arith.constant 0 : i32
    %c0_i32_0 = arith.constant 0 : i32
    return %arg0, %c0_i32 : i32, i32
  }
  func.func @transform_1(%arg0: i32) -> (i32, i32) {
    %c0_i32 = arith.constant 0 : i32
    %c0_i32_0 = arith.constant 0 : i32
    %c0_i32_1 = arith.constant 0 : i32
    return %c0_i32, %c0_i32_0 : i32, i32
  }
  func.func @transform_2(%arg0: i32) -> (i32, i32) {
    %c0_i32 = arith.constant 0 : i32
    %c0_i32_0 = arith.constant 0 : i32
    %c0_i32_1 = arith.constant 0 : i32
    return %c0_i32, %c0_i32_0 : i32, i32
  }
  func.func @transform_3(%arg0: i32) -> (i32, i32) {
    %c0_i32 = arith.constant 0 : i32
    %c0_i32_0 = arith.constant 0 : i32
    return %arg0, %c0_i32 : i32, i32
  }
}

</mosaic_0001>

<llo_original>
// kernel: tpu_custom_call.1
$region0: #{tpu_custom_call.1}
  #allocation0 [shape = 'u32[]', space=smem, size = 0x4, offset = 0x4, fixed_abs, tag = 'smem constant byte address 0x4 - core index']
  #allocation1 [shape = 'u32[144,128]{1,0:T(1,128)}', space=vmem, size = 0x12000, scoped, tag = 'internal scratch']
  %s0 = inlined_call_operand.vmem [shape: f32[96,32], index: 0, kind: input, shape index: {}]
  %s1 = inlined_call_operand.vmem [shape: f32[32,32], index: 1, kind: input, shape index: {}]
  %s2 = inlined_call_operand.vmem [shape: f32[1,32], index: 2, kind: input, shape index: {}]
  %s3 = inlined_call_operand.vmem [shape: f32[96,32], index: 3, kind: output, shape index: {}]
  %s4 = sld [smem:[#allocation0]]
  $region22: #{tpu_custom_call.1} parent=0
    _
  %s6 = ssub.s32 1, %s4
  %s7 = scalar_select 0, %s6, %s4
  // Predicated region
  $region2: #{tpu_custom_call.1} parent=0 // pred_check
    _
  $region3: #{tpu_custom_call.1} parent=0 // pred_check_branch
    %9 = sbr.rel (0) target = $region5
  $region4: #{tpu_custom_call.1} parent=0 // pred_region
    _
  $region5: #{tpu_custom_call.1} parent=0 // pred_fallthru
    _
  // Predicated region
  $region6: #{tpu_custom_call.1} parent=0 // pred_check
    _
  $region7: #{tpu_custom_call.1} parent=0 // pred_check_branch
    %11 = sbr.rel (0) target = $region9
  $region8: #{tpu_custom_call.1} parent=0 // pred_region
    _
  $region9: #{tpu_custom_call.1} parent=0 // pred_fallthru
    _
  // Predicated region
  $region10: #{tpu_custom_call.1} parent=0 // pred_check
    _
  $region11: #{tpu_custom_call.1} parent=0 // pred_check_branch
    %13 = sbr.rel (0) target = $region13
  $region12: #{tpu_custom_call.1} parent=0 // pred_region
    _
  $region13: #{tpu_custom_call.1} parent=0 // pred_fallthru
    _
  %v14 = vld [vmem:[%s0] sm:$0xff]
  %v15 = vld [vmem:[%s0 + $0x8] sm:$0xff]
  %v16 = vld [vmem:[%s0 + $0x10] sm:$0xff]
  %v17 = vld [vmem:[%s0 + $0x18] sm:$0xff]
  %v18 = vld [vmem:[%s0 + $0x20] sm:$0xff]
  %v19 = vld [vmem:[%s0 + $0x28] sm:$0xff]
  %v20 = vld [vmem:[%s0 + $0x30] sm:$0xff]
  %v21 = vld [vmem:[%s0 + $0x38] sm:$0xff]
  %v22 = vld [vmem:[%s0 + $0x40] sm:$0xff]
  %v23 = vld [vmem:[%s0 + $0x48] sm:$0xff]
  %v24 = vld [vmem:[%s0 + $0x50] sm:$0xff]
  %v25 = vld [vmem:[%s0 + $0x58] sm:$0xff]
  %v26 = vld [vmem:[%s1] sm:$0xff]
  %v27 = vld [vmem:[%s1 + $0x8] sm:$0xff]
  %v28 = vld [vmem:[%s1 + $0x10] sm:$0xff]
  %v29 = vld [vmem:[%s1 + $0x18] sm:$0xff]
  %v30 = vld [vmem:[%s2] sm:$0x1]
  %v32 = vlaneseq
  %v33 = vshrl.u32 %v32, 7
  %v34 = vsub.s32 0, %v33
  %v35 = vrot.slane %v30, %v34
  %vm37 = vcmask 261120
  %v39 = vsel %vm37, %v14, 0
  %v42 = vsel %vm37, %v15, 0
  %v45 = vsel %vm37, %v16, 0
  %v48 = vsel %vm37, %v17, 0
  %v51 = vsel %vm37, %v18, 0
  %v54 = vsel %vm37, %v19, 0
  %v57 = vsel %vm37, %v20, 0
  %v60 = vsel %vm37, %v21, 0
  %v63 = vsel %vm37, %v22, 0
  %v66 = vsel %vm37, %v23, 0
  %v69 = vsel %vm37, %v24, 0
  %v72 = vsel %vm37, %v25, 0
  %74 = vmatprep.subr.mxu0 0.0
  %75 = vmatpush1.msra.mxu0 %v26
  %76 = vmatprep.subr.mxu0 0.0
  %77 = vmatpush1.msra.mxu0 %v27
  %78 = vmatprep.subr.mxu0 0.0
  %79 = vmatpush1.msra.mxu0 %v28
  %80 = vmatprep.subr.mxu0 0.0
  %81 = vmatpush1.msra.mxu0 %v29
  %82 = vmatprep.subr.mxu0 0.0
  %83 = vmatpush1.msra.mxu0 0.0
  %84 = vmatprep.subr.mxu0 0.0
  %85 = vmatpush1.msra.mxu0 0.0
  %86 = vmatprep.subr.mxu0 0.0
  %87 = vmatpush1.msra.mxu0 0.0
  %88 = vmatprep.subr.mxu0 0.0
  %89 = vmatpush1.msra.mxu0 0.0
  %90 = vmatprep.subr.mxu0 0.0
  %91 = vmatpush1.msra.mxu0 0.0
  %92 = vmatprep.subr.mxu0 0.0
  %93 = vmatpush1.msra.mxu0 0.0
  %94 = vmatprep.subr.mxu0 0.0
  %95 = vmatpush1.msra.mxu0 0.0
  %96 = vmatprep.subr.mxu0 0.0
  %97 = vmatpush1.msra.mxu0 0.0
  %98 = vmatprep.subr.mxu0 0.0
  %99 = vmatpush1.msra.mxu0 0.0
  %100 = vmatprep.subr.mxu0 0.0
  %101 = vmatpush1.msra.mxu0 0.0
  %102 = vmatprep.subr.mxu0 0.0
  %103 = vmatpush1.msra.mxu0 0.0
  %104 = vmatprep.subr.mxu0 0.0
  %105 = vmatpush1.msra.mxu0 0.0
  %106 = vmatprep.subr.mxu0 0.0
  %107 = vmatpush1.msra.mxu0 0.0
  %108 = vmatprep.subr.mxu0 0.0
  %109 = vmatpush1.msra.mxu0 0.0
  %110 = vmatprep.subr.mxu0 0.0
  %111 = vmatpush1.msra.mxu0 0.0
  %112 = vmatprep.subr.mxu0 0.0
  %113 = vmatpush1.msra.mxu0 0.0
  %114 = vmatprep.subr.mxu0 0.0
  %115 = vmatpush1.msra.mxu0 0.0
  %116 = vmatprep.subr.mxu0 0.0
  %117 = vmatpush1.msra.mxu0 0.0
  %118 = vmatprep.subr.mxu0 0.0
  %119 = vmatpush1.msra.mxu0 0.0
  %120 = vmatprep.subr.mxu0 0.0
  %121 = vmatpush1.msra.mxu0 0.0
  %122 = vmatprep.subr.mxu0 0.0
  %123 = vmatpush1.msra.mxu0 0.0
  %124 = vmatprep.subr.mxu0 0.0
  %125 = vmatpush1.msra.mxu0 0.0
  %126 = vmatprep.subr.mxu0 0.0
  %127 = vmatpush1.msra.mxu0 0.0
  %128 = vmatprep.subr.mxu0 0.0
  %129 = vmatpush1.msra.mxu0 0.0
  %130 = vmatprep.subr.mxu0 0.0
  %131 = vmatpush1.msra.mxu0 0.0
  %132 = vmatprep.subr.mxu0 0.0
  %133 = vmatpush1.msra.mxu0 0.0
  %134 = vmatprep.subr.mxu0 0.0
  %135 = vmatpush1.msra.mxu0 0.0
  %136 = vmatprep.subr.mxu0 0.0
  %137 = vmatpush1.msra.mxu0 0.0
  %138 = vmatprep.mubr.f32.mxu0 0.0
  %139 = vmatmul.mubr.f32.gmra.mrb[0].mxu0 %v39
  %v140 = vpop.f32.mrb[0].mxu0
  %v141 = vadd.f32 %v35, %v140
  %v142 = vpop.f32.mrb[0].mxu0
  %143 = vmatprep.mubr.f32.mxu0 0.0
  %144 = vmatmul.mubr.f32.gmra.mrb[0].mxu0 %v42
  %v145 = vpop.f32.mrb[0].mxu0
  %v146 = vadd.f32 %v35, %v145
  %v147 = vpop.f32.mrb[0].mxu0
  %148 = vmatprep.mubr.f32.mxu0 0.0
  %149 = vmatmul.mubr.f32.gmra.mrb[0].mxu0 %v45
  %v150 = vpop.f32.mrb[0].mxu0
  %v151 = vadd.f32 %v35, %v150
  %v152 = vpop.f32.mrb[0].mxu0
  %153 = vmatprep.mubr.f32.mxu0 0.0
  %154 = vmatmul.mubr.f32.gmra.mrb[0].mxu0 %v48
  %v155 = vpop.f32.mrb[0].mxu0
  %v156 = vadd.f32 %v35, %v155
  %v157 = vpop.f32.mrb[0].mxu0
  %158 = vmatprep.mubr.f32.mxu0 0.0
  %159 = vmatmul.mubr.f32.gmra.mrb[0].mxu0 %v51
  %v160 = vpop.f32.mrb[0].mxu0
  %v161 = vadd.f32 %v35, %v160
  %v162 = vpop.f32.mrb[0].mxu0
  %163 = vmatprep.mubr.f32.mxu0 0.0
  %164 = vmatmul.mubr.f32.gmra.mrb[0].mxu0 %v54
  %v165 = vpop.f32.mrb[0].mxu0
  %v166 = vadd.f32 %v35, %v165
  %v167 = vpop.f32.mrb[0].mxu0
  %168 = vmatprep.mubr.f32.mxu0 0.0
  %169 = vmatmul.mubr.f32.gmra.mrb[0].mxu0 %v57
  %v170 = vpop.f32.mrb[0].mxu0
  %v171 = vadd.f32 %v35, %v170
  %v172 = vpop.f32.mrb[0].mxu0
  %173 = vmatprep.mubr.f32.mxu0 0.0
  %174 = vmatmul.mubr.f32.gmra.mrb[0].mxu0 %v60
  %v175 = vpop.f32.mrb[0].mxu0
  %v176 = vadd.f32 %v35, %v175
  %v177 = vpop.f32.mrb[0].mxu0
  %178 = vmatprep.mubr.f32.mxu0 0.0
  %179 = vmatmul.mubr.f32.gmra.mrb[0].mxu0 %v63
  %v180 = vpop.f32.mrb[0].mxu0
  %v181 = vadd.f32 %v35, %v180
  %v182 = vpop.f32.mrb[0].mxu0
  %183 = vmatprep.mubr.f32.mxu0 0.0
  %184 = vmatmul.mubr.f32.gmra.mrb[0].mxu0 %v66
  %v185 = vpop.f32.mrb[0].mxu0
  %v186 = vadd.f32 %v35, %v185
  %v187 = vpop.f32.mrb[0].mxu0
  %188 = vmatprep.mubr.f32.mxu0 0.0
  %189 = vmatmul.mubr.f32.gmra.mrb[0].mxu0 %v69
  %v190 = vpop.f32.mrb[0].mxu0
  %v191 = vadd.f32 %v35, %v190
  %v192 = vpop.f32.mrb[0].mxu0
  %193 = vmatprep.mubr.f32.mxu0 0.0
  %194 = vmatmul.mubr.f32.gmra.mrb[0].mxu0 %v72
  %v195 = vpop.f32.mrb[0].mxu0
  %v196 = vadd.f32 %v35, %v195
  %v197 = vpop.f32.mrb[0].mxu0
  %198 = vdwg.mxu0
  %199 = vst.msk [vmem:[%s3] sm:$0xff] %vm37, %v141
  %200 = vst.msk [vmem:[%s3 + $0x8] sm:$0xff] %vm37, %v146
  %201 = vst.msk [vmem:[%s3 + $0x10] sm:$0xff] %vm37, %v151
  %202 = vst.msk [vmem:[%s3 + $0x18] sm:$0xff] %vm37, %v156
  %203 = vst.msk [vmem:[%s3 + $0x20] sm:$0xff] %vm37, %v161
  %204 = vst.msk [vmem:[%s3 + $0x28] sm:$0xff] %vm37, %v166
  %205 = vst.msk [vmem:[%s3 + $0x30] sm:$0xff] %vm37, %v171
  %206 = vst.msk [vmem:[%s3 + $0x38] sm:$0xff] %vm37, %v176
  %207 = vst.msk [vmem:[%s3 + $0x40] sm:$0xff] %vm37, %v181
  %208 = vst.msk [vmem:[%s3 + $0x48] sm:$0xff] %vm37, %v186
  %209 = vst.msk [vmem:[%s3 + $0x50] sm:$0xff] %vm37, %v191
  %210 = vst.msk [vmem:[%s3 + $0x58] sm:$0xff] %vm37, %v196
  // Predicated region
  $region14: #{tpu_custom_call.1} parent=0 // pred_check
    _
  $region15: #{tpu_custom_call.1} parent=0 // pred_check_branch
    %212 = sbr.rel (0) target = $region17
  $region16: #{tpu_custom_call.1} parent=0 // pred_region
    _
  $region17: #{tpu_custom_call.1} parent=0 // pred_fallthru
    _
  // Predicated region
  $region18: #{tpu_custom_call.1} parent=0 // pred_check
    _
  $region19: #{tpu_custom_call.1} parent=0 // pred_check_branch
    %214 = sbr.rel (0) target = $region21
  $region20: #{tpu_custom_call.1} parent=0 // pred_region
    _
  $region21: #{tpu_custom_call.1} parent=0 // pred_fallthru
    _

</llo_original>
